<compile_context>
chip_gen: v7x
topology: tpu7x:2x2x1
jax: 0.10.0
libtpu: 0.0.40
codegen_flags: <defaults>
</compile_context>

<pallas_src>
import functools
import math

import numpy as np
import jax
import jax.numpy as jnp
from jax.experimental import pallas as pl
from jax.experimental.pallas import tpu as pltpu

LANE = 128


def _round_up(x, m):
    return ((x + m - 1) // m) * m


# ------------------------------------------------------------------ kernel
def _conv1d_kernel(x_ref, w_ref, b_ref, o_ref, *, K, dilation, t_tile, x_time_tiled):
    """One (batch, c_out-tile, time-tile) grid step.

    x_ref : (C_in, t_tile)       fast path (K==1, padding==0)
            (C_in, x_len)        general path (full padded time, fetched once per batch)
    w_ref : (K, CO_TILE, C_in)   tap-major weight slabs
    b_ref : (CO_TILE, 1)
    o_ref : (CO_TILE, t_tile)
    """
    if x_time_tiled:
        base = 0                                           # block already is the tile
    else:
        base = pl.multiple_of(pl.program_id(2) * t_tile, t_tile)

    # Per-tap MXU accumulation in f32 (no im2col buffer).
    acc = jnp.dot(w_ref[0], x_ref[:, pl.ds(base, t_tile)],
                  preferred_element_type=jnp.float32)
    for k in range(1, K):
        acc = acc + jnp.dot(w_ref[k], x_ref[:, pl.ds(base + k * dilation, t_tile)],
                            preferred_element_type=jnp.float32)

    o_ref[...] = (acc + b_ref[...]).astype(o_ref.dtype)


# ------------------------------------------------------------------ wrapper
def conv1d(x, weight, bias=None, *, stride=1, padding=0, dilation=1,
           compute_dtype=None, t_tile=512, co_tile=None):
    """nn.Conv1d forward. x: (B, C_in, T), weight: (C_out, C_in, K), bias: (C_out,)."""
    B, C_in, T = x.shape
    C_out, C_in_w, K = weight.shape
    assert C_in_w == C_in
    assert stride == 1, "only stride=1 (the module default) is supported"

    halo = dilation * (K - 1)
    T_out = T + 2 * padding - halo
    assert T_out >= 1

    out_dtype = x.dtype
    if compute_dtype is None:
        compute_dtype = x.dtype          # bf16 opt-in on v6e/v7x (f32 accumulate kept)

    # ---- tile sizes --------------------------------------------------------
    # Lane-dense time tiles (multiples of 128) -> unmasked vst stores.
    t_tile = min(_round_up(t_tile, LANE), _round_up(T_out, LANE))
    nt = pl.cdiv(T_out, t_tile)
    t_out_pad = nt * t_tile

    # C_out tile: 256 fills the v6e/v7x MXU; 128 is v5e-native; small layers use full.
    if co_tile is None:
        if C_out % 256 == 0:
            co_tile = 256
        elif C_out % 128 == 0:
            co_tile = 128
        else:
            co_tile = C_out
    assert C_out % co_tile == 0
    nco = C_out // co_tile

    # ---- operand prep (weight-sized / tail-only host transforms) -----------
    # (C_out, C_in, K) -> (K, C_out, C_in): tap-major slabs for per-tap matmuls.
    w_taps = jnp.transpose(weight, (2, 0, 1)).astype(compute_dtype)
    if bias is None:
        bias = jnp.zeros((C_out,), jnp.float32)
    b2 = bias.reshape(C_out, 1).astype(jnp.float32)

    x_time_tiled = (K == 1 and padding == 0)
    if x_time_tiled:
        x_len = t_out_pad                 # plain blocked tiles, no halo
        left = 0
    else:
        # Conv padding + halo live in one padded copy; the whole (C_in, x_len)
        # slab is DMA'd once per batch element (block index constant over co/t).
        # TODO(synk): replace this host-side pad with an in-kernel VMEM halo fill.
        x_len = t_out_pad + halo
        left = padding
    right = x_len - T - left
    x_p = x if (left == 0 and right == 0) else jnp.pad(x, ((0, 0), (0, 0), (left, right)))
    x_p = x_p.astype(compute_dtype)

    # ---- specs -------------------------------------------------------------
    if x_time_tiled:
        x_spec = pl.BlockSpec((None, C_in, t_tile), lambda b, co, t: (b, 0, t))
        x_block_elems = C_in * t_tile
    else:
        x_spec = pl.BlockSpec((None, C_in, x_len), lambda b, co, t: (b, 0, 0))
        x_block_elems = C_in * x_len

    w_spec = pl.BlockSpec((K, co_tile, C_in), lambda b, co, t: (0, co, 0))
    b_spec = pl.BlockSpec((co_tile, 1), lambda b, co, t: (co, 0))
    o_spec = pl.BlockSpec((None, co_tile, t_tile), lambda b, co, t: (b, co, t))

    kernel = functools.partial(_conv1d_kernel, K=K, dilation=dilation,
                               t_tile=t_tile, x_time_tiled=x_time_tiled)

    # ---- VMEM budget (v7x has 64 MiB physical / 32 MiB default scoped) -----
    isize = jnp.dtype(compute_dtype).itemsize
    osize = jnp.dtype(out_dtype).itemsize
    vmem_est = (2 * (x_block_elems * isize
                     + K * co_tile * C_in * isize
                     + co_tile * 4
                     + co_tile * t_tile * osize)
                + co_tile * t_tile * 4)
    vmem_limit = int(min(48 * 2**20, max(32 * 2**20, 2 * vmem_est)))

    cost = pl.CostEstimate(
        flops=2 * B * C_out * C_in * K * T_out,
        transcendentals=0,
        bytes_accessed=(x.size * x.dtype.itemsize
                        + weight.size * weight.dtype.itemsize
                        + C_out * 4
                        + B * C_out * T_out * osize))

    out = pl.pallas_call(
        kernel,
        out_shape=jax.ShapeDtypeStruct((B, C_out, t_out_pad), out_dtype),
        grid_spec=pltpu.PrefetchScalarGridSpec(
            num_scalar_prefetch=0,
            grid=(B, nco, nt),
            in_specs=[x_spec, w_spec, b_spec],
            out_specs=o_spec),
        compiler_params=pltpu.CompilerParams(
            dimension_semantics=("parallel", "parallel", "parallel"),
            vmem_limit_bytes=vmem_limit),
        cost_estimate=cost,
    )(x_p, w_taps, b2)

    return out if t_out_pad == T_out else out[:, :, :T_out]


# ------------------------------------------------------------------ pure-JAX reference
def conv1d_reference(x, weight, bias=None, *, stride=1, padding=0, dilation=1, **_):
    out = jax.lax.conv_general_dilated(
        x, weight,
        window_strides=(stride,),
        padding=[(padding, padding)],
        rhs_dilation=(dilation,),
        dimension_numbers=("NCH", "OIH", "NCH"),
        precision=jax.lax.Precision.HIGHEST)
    if bias is not None:
        out = out + bias[None, :, None]
    return out


# ------------------------------------------------------------------ main
if __name__ == "__main__":
    key = jax.random.PRNGKey(0)
    ks = jax.random.split(key, 12)

    def xavier(k, c_out, c_in, ksz):  # xavier_uniform, gain('linear') = 1
        limit = math.sqrt(6.0 / (c_in * ksz + c_out * ksz))
        return jax.random.uniform(k, (c_out, c_in, ksz), jnp.float32, -limit, limit)

    def check(name, x, w, b, **kw):
        y = jax.block_until_ready(conv1d(x, w, b, **kw))
        r = conv1d_reference(x, w, b, **{k: v for k, v in kw.items()
                                         if k in ("stride", "padding", "dilation")})
        assert y.shape == r.shape, (name, y.shape, r.shape)
        np.testing.assert_allclose(np.asarray(y), np.asarray(r),
                                   rtol=1e-4, atol=1e-4, err_msg=name)

    # Case 1: module defaults -> nn.Conv1d(32, 32, kernel_size=1, bias=True).
    B, C_in, C_out, T = 2, 32, 32, 16
    w = xavier(ks[0], C_out, C_in, 1)
    b = 0.01 * jax.random.normal(ks[1], (C_out,), jnp.float32)
    x = jax.random.normal(ks[2], (B, C_in, T), jnp.float32)
    check("k1_defaults", x, w, b)

    # Case 2: FastSpeech conv variant (kernel_size=3, padding=1) -> general path.
    w = xavier(ks[3], C_out, C_in, 3)
    b = 0.01 * jax.random.normal(ks[4], (C_out,), jnp.float32)
    x = jax.random.normal(ks[5], (B, C_in, T), jnp.float32)
    check("k3_pad1", x, w, b, padding=1)

    # Case 3: longer sequence -> multiple lane-dense time tiles on the K=1 fast path.
    T3 = 640
    w = xavier(ks[6], C_out, C_in, 1)
    b = 0.01 * jax.random.normal(ks[7], (C_out,), jnp.float32)
    x = jax.random.normal(ks[8], (B, C_in, T3), jnp.float32)
    check("k1_long", x, w, b)

    # Case 4: C_out tiling (2 tiles) + dilation on the general path.
    C_in4, C_out4, T4 = 64, 256, 256
    w = xavier(ks[9], C_out4, C_in4, 3)
    b = 0.01 * jax.random.normal(ks[10], (C_out4,), jnp.float32)
    x = jax.random.normal(ks[11], (B, C_in4, T4), jnp.float32)
    check("k3_dil2_cotile", x, w, b, padding=2, dilation=2, co_tile=128)

    print("KERNEL_OK")
</pallas_src>

<mosaic_0001>
module attributes {stable_mosaic.version = 11 : i64} {
  func.func @_conv1d_kernel(%arg0: i32, %arg1: i32, %arg2: i32, %arg3: memref<1x32x128xf32, #tpu.memory_space<vmem>>, %arg4: memref<1x32x32xf32, #tpu.memory_space<vmem>>, %arg5: memref<32x1xf32, #tpu.memory_space<vmem>>, %arg6: memref<1x32x128xf32, #tpu.memory_space<vmem>>) attributes {dimension_semantics = [#tpu.dimension_semantics<parallel>, #tpu.dimension_semantics<parallel>, #tpu.dimension_semantics<parallel>], iteration_bounds = array<i64: 2, 1, 1>, scalar_prefetch = 0 : i64, scratch_operands = 0 : i64, tpu.core_type = #tpu.core_type<tc>, window_params = [{transform_indices = @transform_0, window_bounds = array<i64: 1, 32, 128>}, {transform_indices = @transform_1, window_bounds = array<i64: 1, 32, 32>}, {transform_indices = @transform_2, window_bounds = array<i64: 32, 1>}, {transform_indices = @transform_3, window_bounds = array<i64: 1, 32, 128>}]} {
    %c0 = arith.constant 0 : index
    %c0_0 = arith.constant 0 : index
    %c0_1 = arith.constant 0 : index
    %0 = vector.load %arg4[%c0, %c0_0, %c0_1] : memref<1x32x32xf32, #tpu.memory_space<vmem>>, vector<1x32x32xf32>
    %1 = vector.shape_cast %0 : vector<1x32x32xf32> to vector<32x32xf32>
    %c0_2 = arith.constant 0 : index
    %c0_3 = arith.constant 0 : index
    %c0_4 = arith.constant 0 : index
    %2 = vector.load %arg3[%c0_2, %c0_3, %c0_4] : memref<1x32x128xf32, #tpu.memory_space<vmem>>, vector<1x32x128xf32>
    %3 = vector.shape_cast %2 : vector<1x32x128xf32> to vector<32x128xf32>
    %cst = arith.constant dense<0.000000e+00> : vector<32x128xf32>
    %4 = tpu.matmul %1, %3, %cst {dimension_numbers = #tpu.dot_dimension_numbers<[1], [0], [0], [1], [0, 0, 1, 1], [], []>} : vector<32x32xf32>, vector<32x128xf32>, vector<32x128xf32> -> vector<32x128xf32>
    %c0_5 = arith.constant 0 : index
    %c0_6 = arith.constant 0 : index
    %5 = vector.load %arg5[%c0_5, %c0_6] : memref<32x1xf32, #tpu.memory_space<vmem>>, vector<32x1xf32>
    %6 = vector.broadcast %5 : vector<32x1xf32> to vector<32x128xf32>
    %7 = arith.addf %4, %6 : vector<32x128xf32>
    %c0_7 = arith.constant 0 : index
    %c0_8 = arith.constant 0 : index
    %c0_9 = arith.constant 0 : index
    %8 = vector.load %arg6[%c0_7, %c0_8, %c0_9] : memref<1x32x128xf32, #tpu.memory_space<vmem>>, vector<1x32x128xf32>
    %9 = vector.shape_cast %8 : vector<1x32x128xf32> to vector<32x128xf32>
    %10 = vector.shape_cast %7 : vector<32x128xf32> to vector<1x32x128xf32>
    tpu.vector_store %arg6[%c0_7, %c0_8, %c0_9], %10 {strides = array<i32>} : memref<1x32x128xf32, #tpu.memory_space<vmem>>, vector<1x32x128xf32>,
    return
  }
  func.func @transform_0(%arg0: i32, %arg1: i32, %arg2: i32) -> (i32, i32, i32) {
    %c0_i32 = arith.constant 0 : i32
    %c0_i32_0 = arith.constant 0 : i32
    return %arg0, %c0_i32, %arg2 : i32, i32, i32
  }
  func.func @transform_1(%arg0: i32, %arg1: i32, %arg2: i32) -> (i32, i32, i32) {
    %c0_i32 = arith.constant 0 : i32
    %c0_i32_0 = arith.constant 0 : i32
    %c0_i32_1 = arith.constant 0 : i32
    return %c0_i32, %arg1, %c0_i32_0 : i32, i32, i32
  }
  func.func @transform_2(%arg0: i32, %arg1: i32, %arg2: i32) -> (i32, i32) {
    %c0_i32 = arith.constant 0 : i32
    %c0_i32_0 = arith.constant 0 : i32
    return %arg1, %c0_i32 : i32, i32
  }
  func.func @transform_3(%arg0: i32, %arg1: i32, %arg2: i32) -> (i32, i32, i32) {
    %c0_i32 = arith.constant 0 : i32
    return %arg0, %arg1, %arg2 : i32, i32, i32
  }
}

</mosaic_0001>

<llo_original>
// kernel: tpu_custom_call.1
$region0: #{tpu_custom_call.1}
  #allocation0 [shape = 'u32[]', space=smem, size = 0x4, offset = 0x4, fixed_abs, tag = 'smem constant byte address 0x4 - core index']
  #allocation1 [shape = 'u32[144,128]{1,0:T(1,128)}', space=vmem, size = 0x12000, scoped, tag = 'internal scratch']
  %s0 = inlined_call_operand.hbm [shape: f32[2,32,128], index: 0, kind: input, shape index: {}]
  %s1 = inlined_call_operand.vmem [shape: f32[1,32,32], index: 1, kind: input, shape index: {}]
  %s2 = inlined_call_operand.vmem [shape: f32[32,1], index: 2, kind: input, shape index: {}]
  %s3 = inlined_call_operand.hbm [shape: f32[2,32,128], index: 3, kind: output, shape index: {}]
  %s4 = sld [smem:[#allocation0]]
  $region49: #{tpu_custom_call.1} parent=0
    _
  %s6 = ssub.s32 1, %s4
  %s7 = scalar_select 0, %s6, %s4
  $region1: #{tpu_custom_call.1} parent=0
    #allocation2 [shape = 'u8[32768]{0}', space=vmem, size = 0x8000, scoped, tag = 'input window, operand 0']
    #allocation3 [shape = 's32[2]{0}', space=sflag, size = 0x8, scoped, tag = 'scoped memory for tpu_custom_call.1']
    #allocation4 [shape = 's32[2]{0}', space=sflag, size = 0x8, scoped, tag = 'scoped memory for tpu_custom_call.1']
    #allocation5 [shape = 'u8[32768]{0}', space=vmem, size = 0x8000, scoped, tag = 'output window, operand 0']
    %8 = vsyncpa [#allocation3], 0
    %s9 = scalar_lea.sflag [#allocation3], 1
    %10 = vsyncpa %s9, 0
    %11 = vsyncpa [#allocation4], 0
    %s12 = scalar_lea.sflag [#allocation4], 1
    %13 = vsyncpa %s12, 0
    loop: start=0, step=1, limit=4
    $region2: #{tpu_custom_call.1} parent=1 // loop_pre_header
      _
    $region3: #{tpu_custom_call.1} parent=1 // loop_header
      %s15 = sphi 0, %s19
      %p16 = scmp.ge.s32.totalorder %s15, 4
      %s22 = sphi 0, %s41
      %s23 = sphi 0, %s37
      %s24 = sphi 0, %s33
      %s25 = sphi 0, %s22
      %s26 = sphi 0, %s23
      %s27 = sphi 0, %s24
      %s28 = sphi 0, %s25
      %s29 = sphi 0, %s26
      %s30 = sphi 0, %s27
      %s46 = sphi 0, %s48
      %s49 = sphi 0, %s46
      %s50 = sphi 0, %s49
      %s66 = sphi 0, %s50
      %s72 = sphi 0, %s74
      %s75 = sphi 0, %s72
      %s76 = sphi 0, %s75
      %s92 = sphi 0, %s76
      %s98 = sphi 0, %s100
      %s101 = sphi 0, %s98
      %s102 = sphi 0, %s101
      %s118 = sphi 0, %s102
      %s128 = sphi 0, %s130
      %s131 = sphi 0, %s128
      %s132 = sphi 0, %s131
      %s148 = sphi 0, %s132
    $region4: #{tpu_custom_call.1} parent=1 // loop_header_branch
      %18 = sbr.rel (%p16) target = $region8
    $region5: #{tpu_custom_call.1} parent=1 // loop_body
      %s20 = ssub.s32 %s15, 1
      %s21 = ssub.s32 %s15, 2
      %s31 = sadd.s32 1, %s24
      %p32 = scmp.ge.s32.totalorder %s31, 1
      %s33 = scalar_select %p32, 0, %s31
      %s34 = sadd.s32 1, %s23
      %s35 = scalar_select %p32, %s34, %s23
      %p36 = scmp.ge.s32.totalorder %s35, 1
      %s37 = scalar_select %p36, 0, %s35
      %s38 = sadd.s32 1, %s22
      %s39 = scalar_select %p36, %s38, %s22
      %p40 = scmp.ge.s32.totalorder %s39, 2
      %s41 = scalar_select %p40, 0, %s39
      %s42 = ssub.s32 %s22, %s41
      %s43 = ssub.s32 %s24, %s33
      %s44 = sor.u32 %s42, %s43
      %p45 = scmp.eq.s32.totalorder %s44, 0
      %s47 = sadd.s32 %s46, 1
      %s48 = scalar_select %p45, %s46, %s47
      %p51 = pneg %p45
      %p52 = scmp.eq.s32.totalorder %s15, 1
      %p53 = por %p51, %p52
      %p54 = scmp.ne.s32.totalorder %s46, %s49
      %p55 = scmp.eq.s32.totalorder %s15, 0
      %p56 = por %p54, %p55
      %p57 = scmp.ne.s32.totalorder %s46, %s49
      %p58 = scmp.eq.s32.totalorder %s20, 1
      %p59 = por %p57, %p58
      %p60 = scmp.ne.s32.totalorder %s49, %s50
      %p61 = scmp.eq.s32.totalorder %s20, 0
      %p62 = por %p60, %p61
      %p63 = scmp.ne.s32.totalorder %s49, %s50
      %p64 = scmp.eq.s32.totalorder %s21, 1
      %p65 = por %p63, %p64
      %p67 = scmp.ne.s32.totalorder %s50, %s66
      %p68 = scmp.eq.s32.totalorder %s21, 0
      %p69 = por %p67, %p68
      %s70 = ssub.s32 %s23, %s37
      %p71 = scmp.eq.s32.totalorder %s70, 0
      %s73 = sadd.s32 %s72, 1
      %s74 = scalar_select %p71, %s72, %s73
      %p77 = pneg %p71
      %p78 = scmp.eq.s32.totalorder %s15, 1
      %p79 = por %p77, %p78
      %p80 = scmp.ne.s32.totalorder %s72, %s75
      %p81 = scmp.eq.s32.totalorder %s15, 0
      %p82 = por %p80, %p81
      %p83 = scmp.ne.s32.totalorder %s72, %s75
      %p84 = scmp.eq.s32.totalorder %s20, 1
      %p85 = por %p83, %p84
      %p86 = scmp.ne.s32.totalorder %s75, %s76
      %p87 = scmp.eq.s32.totalorder %s20, 0
      %p88 = por %p86, %p87
      %p89 = scmp.ne.s32.totalorder %s75, %s76
      %p90 = scmp.eq.s32.totalorder %s21, 1
      %p91 = por %p89, %p90
      %p93 = scmp.ne.s32.totalorder %s76, %s92
      %p94 = scmp.eq.s32.totalorder %s21, 0
      %p95 = por %p93, %p94
      %s96 = ssub.s32 %s23, %s37
      %p97 = scmp.eq.s32.totalorder %s96, 0
      %s99 = sadd.s32 %s98, 1
      %s100 = scalar_select %p97, %s98, %s99
      %p103 = pneg %p97
      %p104 = scmp.eq.s32.totalorder %s15, 1
      %p105 = por %p103, %p104
      %p106 = scmp.ne.s32.totalorder %s98, %s101
      %p107 = scmp.eq.s32.totalorder %s15, 0
      %p108 = por %p106, %p107
      %p109 = scmp.ne.s32.totalorder %s98, %s101
      %p110 = scmp.eq.s32.totalorder %s20, 1
      %p111 = por %p109, %p110
      %p112 = scmp.ne.s32.totalorder %s101, %s102
      %p113 = scmp.eq.s32.totalorder %s20, 0
      %p114 = por %p112, %p113
      %p115 = scmp.ne.s32.totalorder %s101, %s102
      %p116 = scmp.eq.s32.totalorder %s21, 1
      %p117 = por %p115, %p116
      %p119 = scmp.ne.s32.totalorder %s102, %s118
      %p120 = scmp.eq.s32.totalorder %s21, 0
      %p121 = por %p119, %p120
      %s122 = ssub.s32 %s22, %s41
      %s123 = ssub.s32 %s23, %s37
      %s124 = sor.u32 %s122, %s123
      %s125 = ssub.s32 %s24, %s33
      %s126 = sor.u32 %s124, %s125
      %p127 = scmp.eq.s32.totalorder %s126, 0
      %s129 = sadd.s32 %s128, 1
      %s130 = scalar_select %p127, %s128, %s129
      %p133 = pneg %p127
      %p134 = scmp.eq.s32.totalorder %s15, 1
      %p135 = por %p133, %p134
      %p136 = scmp.ne.s32.totalorder %s128, %s131
      %p137 = scmp.eq.s32.totalorder %s15, 0
      %p138 = por %p136, %p137
      %p139 = scmp.ne.s32.totalorder %s128, %s131
      %p140 = scmp.eq.s32.totalorder %s20, 1
      %p141 = por %p139, %p140
      %p142 = scmp.ne.s32.totalorder %s131, %s132
      %p143 = scmp.eq.s32.totalorder %s20, 0
      %p144 = por %p142, %p143
      %p145 = scmp.ne.s32.totalorder %s131, %s132
      %p146 = scmp.eq.s32.totalorder %s21, 1
      %p147 = por %p145, %p146
      %p149 = scmp.ne.s32.totalorder %s132, %s148
      %p150 = scmp.eq.s32.totalorder %s21, 0
      %p151 = por %p149, %p150
      %p152 = scmp.le.s32.totalorder 1, %s15
      %p153 = scmp.lt.s32.totalorder %s15, 3
      %p154 = pnand %p152, %p153
      %p155 = pneg %p154
      // Predicated region
      $region9: #{tpu_custom_call.1} parent=5 // pred_check
        _
      $region10: #{tpu_custom_call.1} parent=5 // pred_check_branch
        %157 = sbr.rel (%p154) target = $region12
      $region11: #{tpu_custom_call.1} parent=5 // pred_region
        %s158 = ssub.s32 %s15, 1
        // Predicated region
        $region13: #{tpu_custom_call.1} parent=11 // pred_check
          %p159 = pneg %p88
        $region14: #{tpu_custom_call.1} parent=11 // pred_check_branch
          %161 = sbr.rel (%p159) target = $region16
        $region15: #{tpu_custom_call.1} parent=11 // pred_region
          %s162 = smul.u32 4, %s26
          %p163 = scmp.lt.s32.totalorder %s162, 3
          %s164 = scalar_select %p163, %s162, 3
          %s165 = smul.addr %s164, 8
          %s166 = scalar_lea.vmem %s1, %s165
          %s167 = smul.u32 4, %s26
        $region16: #{tpu_custom_call.1} parent=11 // pred_fallthru
          _
        // Predicated region
        $region17: #{tpu_custom_call.1} parent=11 // pred_check
          %p168 = pneg %p114
        $region18: #{tpu_custom_call.1} parent=11 // pred_check_branch
          %170 = sbr.rel (%p168) target = $region20
        $region19: #{tpu_custom_call.1} parent=11 // pred_region
          %s171 = smul.u32 4, %s26
          %p172 = scmp.lt.s32.totalorder %s171, 3
          %s173 = scalar_select %p172, %s171, 3
          %s174 = smul.addr %s173, 8
          %s175 = scalar_lea.vmem %s2, %s174
          %s176 = smul.u32 4, %s26
        $region20: #{tpu_custom_call.1} parent=11 // pred_fallthru
          _
      $region12: #{tpu_custom_call.1} parent=5 // pred_fallthru
        _
      %p177 = scmp.lt.s32.totalorder %s15, 2
      // Predicated region
      $region21: #{tpu_custom_call.1} parent=5 // pred_check
        %p178 = pneg %p177
      $region22: #{tpu_custom_call.1} parent=5 // pred_check_branch
        %180 = sbr.rel (%p178) target = $region24
      $region23: #{tpu_custom_call.1} parent=5 // pred_region
        // Predicated region
        $region25: #{tpu_custom_call.1} parent=23 // pred_check
          %p181 = pneg %p56
        $region26: #{tpu_custom_call.1} parent=23 // pred_check_branch
          %183 = sbr.rel (%p181) target = $region28
        $region27: #{tpu_custom_call.1} parent=23 // pred_region
          %s184 = sand.u32 %s46, 1
          %s185 = scalar_lea.sflag [#allocation3], %s184
          %s186 = sand.u32 %s46, 1
          %s187 = smul.addr %s186, 32
          %s188 = scalar_lea.vmem [#allocation2], %s187
          %s190 = ssub.s32 512, 512
          %191 = vsyncadd %s185, %s190
          %s192 = smul.addr %s22, 4
          %s193 = sadd.s32 %s24, %s192
          %s194 = smul.addr %s193, 128
          %s195 = scalar_lea.hbm %s0, %s194
          %s196 = sshll.u32 %s188, 4
          %s197 = int_to_ptr.vmem [resolvable:$true] %s196
          %202 = dma.hbm_to_vmem [thread:$0]  %s195, 512, %s197, %s185, 128, 128, 8
        $region28: #{tpu_custom_call.1} parent=23 // pred_fallthru
          _
      $region24: #{tpu_custom_call.1} parent=5 // pred_fallthru
        _
      %p203 = scmp.le.s32.totalorder 1, %s15
      %p204 = scmp.lt.s32.totalorder %s15, 3
      %p205 = pnand %p203, %p204
      %p206 = pneg %p205
      // Predicated region
      $region29: #{tpu_custom_call.1} parent=5 // pred_check
        _
      $region30: #{tpu_custom_call.1} parent=5 // pred_check_branch
        %208 = sbr.rel (%p205) target = $region32
      $region31: #{tpu_custom_call.1} parent=5 // pred_region
        %s209 = ssub.s32 %s15, 1
        %s210 = sand.u32 %s49, 1
        %s211 = scalar_lea.sflag [#allocation3], %s210
        %s212 = sand.u32 %s49, 1
        %s213 = smul.addr %s212, 32
        %s214 = scalar_lea.vmem [#allocation2], %s213
        // Predicated region
        $region33: #{tpu_custom_call.1} parent=31 // pred_check
          %p215 = pneg %p62
        $region34: #{tpu_custom_call.1} parent=31 // pred_check_branch
          %217 = sbr.rel (%p215) target = $region36
        $region35: #{tpu_custom_call.1} parent=31 // pred_region
          %218 = dma.done %s211, 512
        $region36: #{tpu_custom_call.1} parent=31 // pred_fallthru
          _
        %s219 = sand.u32 %s49, 1
        %s220 = scalar_lea.sflag [#allocation3], %s219
        %s221 = sand.u32 %s49, 1
        %s222 = smul.addr %s221, 32
        %s223 = scalar_lea.vmem [#allocation2], %s222
        %p224 = pneg %p62
        %p225 = pneg %p59
        %s226 = smul.u32 4, %s26
        %p227 = scmp.lt.s32.totalorder %s226, 3
        %s228 = scalar_select %p227, %s226, 3
        %s229 = smul.addr %s228, 8
        %s230 = scalar_lea.vmem %s1, %s229
        %p231 = pneg %p88
        %p232 = pneg %p85
        %s233 = smul.u32 4, %s26
        %p234 = scmp.lt.s32.totalorder %s233, 3
        %s235 = scalar_select %p234, %s233, 3
        %s236 = smul.addr %s235, 8
        %s237 = scalar_lea.vmem %s2, %s236
        %p238 = pneg %p114
        %p239 = pneg %p111
        %p240 = pneg %p144
        %p241 = pneg %p141
        %s242 = sand.u32 %s131, 1
        %s243 = scalar_lea.sflag [#allocation4], %s242
        %s244 = sand.u32 %s131, 1
        %s245 = smul.addr %s244, 32
        %s246 = scalar_lea.vmem [#allocation5], %s245
        %s247 = smul.u32 4, %s26
        %p248 = scmp.lt.s32.totalorder %s247, 3
        %s249 = scalar_select %p248, %s247, 3
        %s250 = smul.addr %s249, 8
        %s251 = scalar_lea.vmem %s1, %s250
        %s252 = smul.u32 4, %s26
        %s253 = smul.u32 4, %s26
        %p254 = scmp.lt.s32.totalorder %s253, 3
        %s255 = scalar_select %p254, %s253, 3
        %s256 = smul.addr %s255, 8
        %s257 = scalar_lea.vmem %s2, %s256
        %s258 = smul.u32 4, %s26
        %s259 = smul.u32 4, %s26
        %v260 = vld [vmem:[%s251] sm:$0xff]
        %v261 = vld [vmem:[%s251 + $0x8] sm:$0xff]
        %v262 = vld [vmem:[%s251 + $0x10] sm:$0xff]
        %v263 = vld [vmem:[%s251 + $0x18] sm:$0xff]
        %v264 = vld [vmem:[%s214] sm:$0xff]
        %v265 = vld [vmem:[%s214 + $0x8] sm:$0xff]
        %v266 = vld [vmem:[%s214 + $0x10] sm:$0xff]
        %v267 = vld [vmem:[%s214 + $0x18] sm:$0xff]
        %v268 = vld [vmem:[%s257] sm:$0xff]
        %v269 = vld [vmem:[%s257 + $0x8] sm:$0xff]
        %v270 = vld [vmem:[%s257 + $0x10] sm:$0xff]
        %v271 = vld [vmem:[%s257 + $0x18] sm:$0xff]
        %273 = vset.pattern.permute.xlu0 0
        %274 = vperm.xlu0 %273, %v268
        %v275 = vpop.permute.xlu0 %274
        %278 = vset.pattern.permute.xlu0 0
        %279 = vperm.xlu0 %278, %v269
        %v280 = vpop.permute.xlu0 %279
        %283 = vset.pattern.permute.xlu0 0
        %284 = vperm.xlu0 %283, %v270
        %v285 = vpop.permute.xlu0 %284
        %288 = vset.pattern.permute.xlu0 0
        %289 = vperm.xlu0 %288, %v271
        %v290 = vpop.permute.xlu0 %289
        %vm292 = vcmask 261120
        %v294 = vsel %vm292, %v260, 0
        %v297 = vsel %vm292, %v261, 0
        %v300 = vsel %vm292, %v262, 0
        %v303 = vsel %vm292, %v263, 0
        %305 = vmatprep.subr.mxu0 0.0
        %306 = vmatpush1.msra.mxu0 %v264
        %307 = vmatprep.subr.mxu0 0.0
        %308 = vmatpush1.msra.mxu0 %v265
        %309 = vmatprep.subr.mxu0 0.0
        %310 = vmatpush1.msra.mxu0 %v266
        %311 = vmatprep.subr.mxu0 0.0
        %312 = vmatpush1.msra.mxu0 %v267
        %313 = vmatprep.subr.mxu0 0.0
        %314 = vmatpush1.msra.mxu0 0.0
        %315 = vmatprep.subr.mxu0 0.0
        %316 = vmatpush1.msra.mxu0 0.0
        %317 = vmatprep.subr.mxu0 0.0
        %318 = vmatpush1.msra.mxu0 0.0
        %319 = vmatprep.subr.mxu0 0.0
        %320 = vmatpush1.msra.mxu0 0.0
        %321 = vmatprep.subr.mxu0 0.0
        %322 = vmatpush1.msra.mxu0 0.0
        %323 = vmatprep.subr.mxu0 0.0
        %324 = vmatpush1.msra.mxu0 0.0
        %325 = vmatprep.subr.mxu0 0.0
        %326 = vmatpush1.msra.mxu0 0.0
        %327 = vmatprep.subr.mxu0 0.0
        %328 = vmatpush1.msra.mxu0 0.0
        %329 = vmatprep.subr.mxu0 0.0
        %330 = vmatpush1.msra.mxu0 0.0
        %331 = vmatprep.subr.mxu0 0.0
        %332 = vmatpush1.msra.mxu0 0.0
        %333 = vmatprep.subr.mxu0 0.0
        %334 = vmatpush1.msra.mxu0 0.0
        %335 = vmatprep.subr.mxu0 0.0
        %336 = vmatpush1.msra.mxu0 0.0
        %337 = vmatprep.subr.mxu0 0.0
        %338 = vmatpush1.msra.mxu0 0.0
        %339 = vmatprep.subr.mxu0 0.0
        %340 = vmatpush1.msra.mxu0 0.0
        %341 = vmatprep.subr.mxu0 0.0
        %342 = vmatpush1.msra.mxu0 0.0
        %343 = vmatprep.subr.mxu0 0.0
        %344 = vmatpush1.msra.mxu0 0.0
        %345 = vmatprep.subr.mxu0 0.0
        %346 = vmatpush1.msra.mxu0 0.0
        %347 = vmatprep.subr.mxu0 0.0
        %348 = vmatpush1.msra.mxu0 0.0
        %349 = vmatprep.subr.mxu0 0.0
        %350 = vmatpush1.msra.mxu0 0.0
        %351 = vmatprep.subr.mxu0 0.0
        %352 = vmatpush1.msra.mxu0 0.0
        %353 = vmatprep.subr.mxu0 0.0
        %354 = vmatpush1.msra.mxu0 0.0
        %355 = vmatprep.subr.mxu0 0.0
        %356 = vmatpush1.msra.mxu0 0.0
        %357 = vmatprep.subr.mxu0 0.0
        %358 = vmatpush1.msra.mxu0 0.0
        %359 = vmatprep.subr.mxu0 0.0
        %360 = vmatpush1.msra.mxu0 0.0
        %361 = vmatprep.subr.mxu0 0.0
        %362 = vmatpush1.msra.mxu0 0.0
        %363 = vmatprep.subr.mxu0 0.0
        %364 = vmatpush1.msra.mxu0 0.0
        %365 = vmatprep.subr.mxu0 0.0
        %366 = vmatpush1.msra.mxu0 0.0
        %367 = vmatprep.subr.mxu0 0.0
        %368 = vmatpush1.msra.mxu0 0.0
        %369 = vmatprep.mubr.f32.mxu0 0.0
        %370 = vmatmul.mubr.f32.gmra.mrb[0].mxu0 %v294
        %v371 = vpop.f32.mrb[0].mxu0
        %v372 = vadd.f32 %v275, %v371
        %v373 = vpop.f32.mrb[0].mxu0
        %374 = vmatprep.mubr.f32.mxu0 0.0
        %375 = vmatmul.mubr.f32.gmra.mrb[0].mxu0 %v297
        %v376 = vpop.f32.mrb[0].mxu0
        %v377 = vadd.f32 %v280, %v376
        %v378 = vpop.f32.mrb[0].mxu0
        %379 = vmatprep.mubr.f32.mxu0 0.0
        %380 = vmatmul.mubr.f32.gmra.mrb[0].mxu0 %v300
        %v381 = vpop.f32.mrb[0].mxu0
        %v382 = vadd.f32 %v285, %v381
        %v383 = vpop.f32.mrb[0].mxu0
        %384 = vmatprep.mubr.f32.mxu0 0.0
        %385 = vmatmul.mubr.f32.gmra.mrb[0].mxu0 %v303
        %v386 = vpop.f32.mrb[0].mxu0
        %v387 = vadd.f32 %v290, %v386
        %v388 = vpop.f32.mrb[0].mxu0
        %389 = vdwg.mxu0
        %390 = vst [vmem:[%s246] sm:$0xff] %v372
        %391 = vst [vmem:[%s246 + $0x8] sm:$0xff] %v377
        %392 = vst [vmem:[%s246 + $0x10] sm:$0xff] %v382
        %393 = vst [vmem:[%s246 + $0x18] sm:$0xff] %v387
        %s394 = sand.u32 %s131, 1
        %s395 = scalar_lea.sflag [#allocation4], %s394
        %s396 = sand.u32 %s131, 1
        %s397 = smul.addr %s396, 32
        %s398 = scalar_lea.vmem [#allocation5], %s397
        // Predicated region
        $region37: #{tpu_custom_call.1} parent=31 // pred_check
          %p399 = pneg %p141
        $region38: #{tpu_custom_call.1} parent=31 // pred_check_branch
          %401 = sbr.rel (%p399) target = $region40
        $region39: #{tpu_custom_call.1} parent=31 // pred_region
          %s402 = smul.u32 4, %s26
          %s404 = ssub.s32 512, 512
          %405 = vsyncadd %s395, %s404
          %s406 = sadd.s32 %s27, %s402
          %s407 = smul.addr %s25, 4
          %s408 = sadd.s32 %s406, %s407
          %s409 = smul.addr %s408, 128
          %s410 = scalar_lea.hbm %s3, %s409
          %s411 = sshll.u32 %s398, 4
          %s412 = int_to_ptr.vmem [resolvable:$true] %s411
          %417 = dma.vmem_to_hbm [thread:$0]  %s412, 512, %s410, %s395, 128, 128, 8
        $region40: #{tpu_custom_call.1} parent=31 // pred_fallthru
          _
      $region32: #{tpu_custom_call.1} parent=5 // pred_fallthru
        _
      %p418 = scmp.le.s32.totalorder 2, %s15
      // Predicated region
      $region41: #{tpu_custom_call.1} parent=5 // pred_check
        %p419 = pneg %p418
      $region42: #{tpu_custom_call.1} parent=5 // pred_check_branch
        %421 = sbr.rel (%p419) target = $region44
      $region43: #{tpu_custom_call.1} parent=5 // pred_region
        %s422 = ssub.s32 %s15, 2
        // Predicated region
        $region45: #{tpu_custom_call.1} parent=43 // pred_check
          %p423 = pneg %p147
        $region46: #{tpu_custom_call.1} parent=43 // pred_check_branch
          %425 = sbr.rel (%p423) target = $region48
        $region47: #{tpu_custom_call.1} parent=43 // pred_region
          %s426 = sand.u32 %s132, 1
          %s427 = scalar_lea.sflag [#allocation4], %s426
          %s428 = sand.u32 %s132, 1
          %s429 = smul.addr %s428, 32
          %s430 = scalar_lea.vmem [#allocation5], %s429
          %431 = dma.done %s427, 512
        $region48: #{tpu_custom_call.1} parent=43 // pred_fallthru
          _
      $region44: #{tpu_custom_call.1} parent=5 // pred_fallthru
        _
    $region6: #{tpu_custom_call.1} parent=1 // loop_footer
      %s19 = sadd.s32 1, %s15
    $region7: #{tpu_custom_call.1} parent=1 // loop_footer_branch
      %14 = sbr.rel target = $region3
    $region8: #{tpu_custom_call.1} parent=1 // loop_exit
      _
    %432 = vsyncpa [#allocation3], 1
    %s433 = scalar_lea.sflag [#allocation3], 1
    %434 = vsyncpa %s433, 1
    %435 = vsyncpa [#allocation4], 1
    %s436 = scalar_lea.sflag [#allocation4], 1
    %437 = vsyncpa %s436, 1

</llo_original>
